<compile_context>
chip_gen: v7x
topology: tpu7x:2x2x1
jax: 0.10.0
libtpu: 0.0.40
codegen_flags: <defaults>
</compile_context>

<pallas_src>
import functools

import jax
import jax.numpy as jnp
import numpy as np
from jax import lax
from jax.experimental import pallas as pl
from jax.experimental.pallas import tpu as pltpu


def _dwconv2d_kernel(x_ref, w_ref, b_ref, m_ref, o_ref, *, W, KH, KW, pad):
    """One row-block (a slab of (n, c) image channels) per grid step.

    x_ref : (RB, HW)      input rows, flattened spatial on the lane axis
    w_ref : (RB, KH*KW)   per-row depthwise taps (weights tiled over batch)
    b_ref : (RB, 1)       per-row bias (zeros when bias=False)
    m_ref : (KH*KW, HW)   0/1 padding masks per tap (VMEM resident, const map)
    o_ref : (RB, HW)      "input-sized" output block (wrapper crops if needed)
    """
    RB, HW = o_ref.shape
    x = x_ref[...]                                   # native dtype for the rolls
    wt = w_ref[...].astype(jnp.float32)              # all taps loaded once

    # Accumulator starts at the broadcast bias -> no separate full-tile bias add.
    acc = jnp.broadcast_to(b_ref[...].astype(jnp.float32), (RB, HW))

    for kh in range(KH):
        dh = kh - pad
        for kw in range(KW):
            dw = kw - pad
            s = dh * W + dw                          # flattened spatial shift
            t = kh * KW + kw
            # out[f] needs x[f + s]; static lane rotation on the XLU.
            shifted = x if s == 0 else pltpu.roll(x, shift=(-s) % HW, axis=1)
            tap = wt[:, t:t + 1]                     # (RB, 1)
            if dh == 0 and dw == 0:
                masked_tap = tap                     # centre tap: mask is all-ones
            else:
                # Zero padding fused as a precomputed 0/1 mask row.
                masked_tap = tap * m_ref[t:t + 1, :]  # (RB, HW)
            acc = acc + shifted * masked_tap          # f32 accumulate
    o_ref[...] = acc.astype(o_ref.dtype)


def dwise_conv2d_pallas(x_nchw, weight, bias, *, padding):
    """Matches torch.nn.Conv2d(C, C, groups=C, kernel_size=K, padding=p) (stride=1, dilation=1).

    x_nchw : (N, C, H, W)
    weight : (C, 1, KH, KW)   PyTorch depthwise layout
    bias   : (C,) or None
    """
    N, C, H, W = x_nchw.shape
    KC, KI, KH, KW = weight.shape
    assert (KC, KI) == (C, 1), "expected depthwise weight of shape (C, 1, KH, KW)"
    pad = int(padding)
    Ho = H + 2 * pad - KH + 1
    Wo = W + 2 * pad - KW + 1
    assert Ho > 0 and Wo > 0, "kernel larger than padded input"
    if Ho > H or Wo > W:
        # TODO(synk): over-padding (2*padding > kernel_size-1) needs an output
        # larger than the input; the fused-padding roll path does not cover it.
        raise NotImplementedError("2*padding > kernel_size-1 is not supported")

    HW = H * W
    R = N * C
    # Free layout change: contiguous collapse of (N,C) and (H,W).
    x2 = x_nchw.reshape(R, HW)

    # Per-row taps / bias (tiled over batch: row r -> channel r % C). Weight/bias
    # are tiny, so the N-fold duplication costs nothing next to x itself.
    w2 = jnp.tile(weight.reshape(C, KH * KW), (N, 1))                 # (R, KH*KW)
    b = bias if bias is not None else jnp.zeros((C,), x_nchw.dtype)
    b2 = jnp.tile(b.reshape(C, 1), (N, 1))                            # (R, 1)

    # Precomputed 0/1 padding masks, one row per tap (host-side constants).
    rows = np.arange(HW, dtype=np.int32) // W
    cols = np.arange(HW, dtype=np.int32) % W
    mask_rows = []
    for kh in range(KH):
        dh = kh - pad
        for kw in range(KW):
            dw = kw - pad
            ok = (rows + dh >= 0) & (rows + dh < H) & (cols + dw >= 0) & (cols + dw < W)
            mask_rows.append(ok)
    mask = jnp.asarray(np.stack(mask_rows, axis=0).astype(np.float32))  # (KH*KW, HW)

    # Row block: multiple of 8 sublanes, ~2 MiB of input per block so the
    # double-buffered in+out pipeline stays comfortably inside VMEM.
    itemsize = jnp.dtype(x_nchw.dtype).itemsize
    bytes_per_row = HW * itemsize
    target_block_bytes = 2 << 20
    if R <= 8 or R * bytes_per_row <= target_block_bytes:
        RB = R
    else:
        rb = max(8, (target_block_bytes // max(bytes_per_row, 1)) // 8 * 8)
        RB = min(rb, (R // 8) * 8)
    grid = (pl.cdiv(R, RB),)

    kernel = functools.partial(_dwconv2d_kernel, W=W, KH=KH, KW=KW, pad=pad)

    out_flat = pl.pallas_call(
        kernel,
        out_shape=jax.ShapeDtypeStruct((R, HW), x_nchw.dtype),
        grid_spec=pltpu.PrefetchScalarGridSpec(
            num_scalar_prefetch=0,
            grid=grid,
            in_specs=[
                pl.BlockSpec((RB, HW), lambda r: (r, 0)),
                pl.BlockSpec((RB, KH * KW), lambda r: (r, 0)),
                pl.BlockSpec((RB, 1), lambda r: (r, 0)),
                pl.BlockSpec((KH * KW, HW), lambda r: (0, 0)),   # VMEM resident
            ],
            out_specs=pl.BlockSpec((RB, HW), lambda r: (r, 0)),
        ),
        compiler_params=pltpu.CompilerParams(
            dimension_semantics=("parallel",),
            vmem_limit_bytes=32 * 1024 * 1024,
        ),
    )(x2, w2, b2, mask)

    out = out_flat.reshape(N, C, H, W)
    if Ho != H or Wo != W:
        out = out[:, :, :Ho, :Wo]     # only when padding < (K-1)//2; no-op for "same"
    return out


if __name__ == "__main__":
    # WrapDwiseConv2d(in_channels=C, kernel_size=3, padding=1, bias=True)
    N, C, H, W = 2, 4, 16, 16
    KH = KW = 3
    padding = 1

    key = jax.random.PRNGKey(0)
    kx, kw_, kb = jax.random.split(key, 3)

    x = jax.random.normal(kx, (N, C, H, W), dtype=jnp.float32)

    # Deterministic parameter init mimicking nn.Conv2d: U(-k, k), k = 1/sqrt(fan_in)
    fan_in = 1 * KH * KW  # groups == in_channels -> 1 input channel per group
    k = 1.0 / jnp.sqrt(jnp.float32(fan_in))
    weight = jax.random.uniform(kw_, (C, 1, KH, KW), jnp.float32, -k, k)
    bias = jax.random.uniform(kb, (C,), jnp.float32, -k, k)

    out = dwise_conv2d_pallas(x, weight, bias, padding=padding)
    out = jax.block_until_ready(out)

    # Reference: depthwise conv via lax.conv_general_dilated (NCHW, OIHW).
    ref = lax.conv_general_dilated(
        x, weight,
        window_strides=(1, 1),
        padding=((padding, padding), (padding, padding)),
        dimension_numbers=("NCHW", "OIHW", "NCHW"),
        feature_group_count=C,
    ) + bias.reshape(1, C, 1, 1)

    assert out.shape == ref.shape == (N, C, H, W), (out.shape, ref.shape)
    assert jnp.allclose(out, ref, atol=1e-5, rtol=1e-5), float(jnp.max(jnp.abs(out - ref)))
    print("KERNEL_OK")
</pallas_src>

<mosaic_0001>
module attributes {stable_mosaic.version = 11 : i64} {
  func.func @_dwconv2d_kernel(%arg0: i32, %arg1: memref<8x256xf32, #tpu.memory_space<vmem>>, %arg2: memref<8x9xf32, #tpu.memory_space<vmem>>, %arg3: memref<8x1xf32, #tpu.memory_space<vmem>>, %arg4: memref<9x256xf32, #tpu.memory_space<vmem>>, %arg5: memref<8x256xf32, #tpu.memory_space<vmem>>) attributes {dimension_semantics = [#tpu.dimension_semantics<parallel>], iteration_bounds = array<i64: 1>, scalar_prefetch = 0 : i64, scratch_operands = 0 : i64, tpu.core_type = #tpu.core_type<tc>, window_params = [{transform_indices = @transform_0, window_bounds = array<i64: 8, 256>}, {transform_indices = @transform_1, window_bounds = array<i64: 8, 9>}, {transform_indices = @transform_2, window_bounds = array<i64: 8, 1>}, {pipeline_mode = #tpu.pipeline_mode<synchronous>, transform_indices = @transform_3, window_bounds = array<i64: 9, 256>}, {transform_indices = @transform_4, window_bounds = array<i64: 8, 256>}]} {
    %c0 = arith.constant 0 : index
    %c0_0 = arith.constant 0 : index
    %0 = vector.load %arg1[%c0, %c0_0] : memref<8x256xf32, #tpu.memory_space<vmem>>, vector<8x256xf32>
    %c0_1 = arith.constant 0 : index
    %c0_2 = arith.constant 0 : index
    %1 = vector.load %arg2[%c0_1, %c0_2] : memref<8x9xf32, #tpu.memory_space<vmem>>, vector<8x9xf32>
    %c0_3 = arith.constant 0 : index
    %c0_4 = arith.constant 0 : index
    %2 = vector.load %arg3[%c0_3, %c0_4] : memref<8x1xf32, #tpu.memory_space<vmem>>, vector<8x1xf32>
    %3 = vector.shape_cast %2 : vector<8x1xf32> to vector<8x1xf32>
    %4 = vector.broadcast %3 : vector<8x1xf32> to vector<8x256xf32>
    %c17_i32 = arith.constant 17 : i32
    %5 = tpu.dynamic_rotate %0 by %c17_i32 dim 1 : vector<8x256xf32>, i32 -> vector<8x256xf32>
    %6 = vector.extract_strided_slice %1 {offsets = [0, 0], sizes = [8, 1], strides = [1, 1]} : vector<8x9xf32> to vector<8x1xf32>
    %c0_5 = arith.constant 0 : index
    %c0_6 = arith.constant 0 : index
    %7 = vector.load %arg4[%c0_5, %c0_6] : memref<9x256xf32, #tpu.memory_space<vmem>>, vector<1x256xf32>
    %8 = vector.broadcast %6 : vector<8x1xf32> to vector<8x256xf32>
    %9 = vector.broadcast %7 : vector<1x256xf32> to vector<8x256xf32>
    %10 = arith.mulf %8, %9 : vector<8x256xf32>
    %11 = arith.mulf %5, %10 : vector<8x256xf32>
    %12 = arith.addf %4, %11 : vector<8x256xf32>
    %c16_i32 = arith.constant 16 : i32
    %13 = tpu.dynamic_rotate %0 by %c16_i32 dim 1 : vector<8x256xf32>, i32 -> vector<8x256xf32>
    %14 = vector.extract_strided_slice %1 {offsets = [0, 1], sizes = [8, 1], strides = [1, 1]} : vector<8x9xf32> to vector<8x1xf32>
    %c1 = arith.constant 1 : index
    %c0_7 = arith.constant 0 : index
    %15 = vector.load %arg4[%c1, %c0_7] : memref<9x256xf32, #tpu.memory_space<vmem>>, vector<1x256xf32>
    %16 = vector.broadcast %14 : vector<8x1xf32> to vector<8x256xf32>
    %17 = vector.broadcast %15 : vector<1x256xf32> to vector<8x256xf32>
    %18 = arith.mulf %16, %17 : vector<8x256xf32>
    %19 = arith.mulf %13, %18 : vector<8x256xf32>
    %20 = arith.addf %12, %19 : vector<8x256xf32>
    %c15_i32 = arith.constant 15 : i32
    %21 = tpu.dynamic_rotate %0 by %c15_i32 dim 1 : vector<8x256xf32>, i32 -> vector<8x256xf32>
    %22 = vector.extract_strided_slice %1 {offsets = [0, 2], sizes = [8, 1], strides = [1, 1]} : vector<8x9xf32> to vector<8x1xf32>
    %c2 = arith.constant 2 : index
    %c0_8 = arith.constant 0 : index
    %23 = vector.load %arg4[%c2, %c0_8] : memref<9x256xf32, #tpu.memory_space<vmem>>, vector<1x256xf32>
    %24 = vector.broadcast %22 : vector<8x1xf32> to vector<8x256xf32>
    %25 = vector.broadcast %23 : vector<1x256xf32> to vector<8x256xf32>
    %26 = arith.mulf %24, %25 : vector<8x256xf32>
    %27 = arith.mulf %21, %26 : vector<8x256xf32>
    %28 = arith.addf %20, %27 : vector<8x256xf32>
    %c1_i32 = arith.constant 1 : i32
    %29 = tpu.dynamic_rotate %0 by %c1_i32 dim 1 : vector<8x256xf32>, i32 -> vector<8x256xf32>
    %30 = vector.extract_strided_slice %1 {offsets = [0, 3], sizes = [8, 1], strides = [1, 1]} : vector<8x9xf32> to vector<8x1xf32>
    %c3 = arith.constant 3 : index
    %c0_9 = arith.constant 0 : index
    %31 = vector.load %arg4[%c3, %c0_9] : memref<9x256xf32, #tpu.memory_space<vmem>>, vector<1x256xf32>
    %32 = vector.broadcast %30 : vector<8x1xf32> to vector<8x256xf32>
    %33 = vector.broadcast %31 : vector<1x256xf32> to vector<8x256xf32>
    %34 = arith.mulf %32, %33 : vector<8x256xf32>
    %35 = arith.mulf %29, %34 : vector<8x256xf32>
    %36 = arith.addf %28, %35 : vector<8x256xf32>
    %37 = vector.extract_strided_slice %1 {offsets = [0, 4], sizes = [8, 1], strides = [1, 1]} : vector<8x9xf32> to vector<8x1xf32>
    %38 = vector.broadcast %37 : vector<8x1xf32> to vector<8x256xf32>
    %39 = arith.mulf %0, %38 : vector<8x256xf32>
    %40 = arith.addf %36, %39 : vector<8x256xf32>
    %c255_i32 = arith.constant 255 : i32
    %41 = tpu.dynamic_rotate %0 by %c255_i32 dim 1 : vector<8x256xf32>, i32 -> vector<8x256xf32>
    %42 = vector.extract_strided_slice %1 {offsets = [0, 5], sizes = [8, 1], strides = [1, 1]} : vector<8x9xf32> to vector<8x1xf32>
    %c5 = arith.constant 5 : index
    %c0_10 = arith.constant 0 : index
    %43 = vector.load %arg4[%c5, %c0_10] : memref<9x256xf32, #tpu.memory_space<vmem>>, vector<1x256xf32>
    %44 = vector.broadcast %42 : vector<8x1xf32> to vector<8x256xf32>
    %45 = vector.broadcast %43 : vector<1x256xf32> to vector<8x256xf32>
    %46 = arith.mulf %44, %45 : vector<8x256xf32>
    %47 = arith.mulf %41, %46 : vector<8x256xf32>
    %48 = arith.addf %40, %47 : vector<8x256xf32>
    %c241_i32 = arith.constant 241 : i32
    %49 = tpu.dynamic_rotate %0 by %c241_i32 dim 1 : vector<8x256xf32>, i32 -> vector<8x256xf32>
    %50 = vector.extract_strided_slice %1 {offsets = [0, 6], sizes = [8, 1], strides = [1, 1]} : vector<8x9xf32> to vector<8x1xf32>
    %c6 = arith.constant 6 : index
    %c0_11 = arith.constant 0 : index
    %51 = vector.load %arg4[%c6, %c0_11] : memref<9x256xf32, #tpu.memory_space<vmem>>, vector<1x256xf32>
    %52 = vector.broadcast %50 : vector<8x1xf32> to vector<8x256xf32>
    %53 = vector.broadcast %51 : vector<1x256xf32> to vector<8x256xf32>
    %54 = arith.mulf %52, %53 : vector<8x256xf32>
    %55 = arith.mulf %49, %54 : vector<8x256xf32>
    %56 = arith.addf %48, %55 : vector<8x256xf32>
    %c240_i32 = arith.constant 240 : i32
    %57 = tpu.dynamic_rotate %0 by %c240_i32 dim 1 : vector<8x256xf32>, i32 -> vector<8x256xf32>
    %58 = vector.extract_strided_slice %1 {offsets = [0, 7], sizes = [8, 1], strides = [1, 1]} : vector<8x9xf32> to vector<8x1xf32>
    %c7 = arith.constant 7 : index
    %c0_12 = arith.constant 0 : index
    %59 = vector.load %arg4[%c7, %c0_12] : memref<9x256xf32, #tpu.memory_space<vmem>>, vector<1x256xf32>
    %60 = vector.broadcast %58 : vector<8x1xf32> to vector<8x256xf32>
    %61 = vector.broadcast %59 : vector<1x256xf32> to vector<8x256xf32>
    %62 = arith.mulf %60, %61 : vector<8x256xf32>
    %63 = arith.mulf %57, %62 : vector<8x256xf32>
    %64 = arith.addf %56, %63 : vector<8x256xf32>
    %c239_i32 = arith.constant 239 : i32
    %65 = tpu.dynamic_rotate %0 by %c239_i32 dim 1 : vector<8x256xf32>, i32 -> vector<8x256xf32>
    %66 = vector.extract_strided_slice %1 {offsets = [0, 8], sizes = [8, 1], strides = [1, 1]} : vector<8x9xf32> to vector<8x1xf32>
    %c8 = arith.constant 8 : index
    %c0_13 = arith.constant 0 : index
    %67 = vector.load %arg4[%c8, %c0_13] : memref<9x256xf32, #tpu.memory_space<vmem>>, vector<1x256xf32>
    %68 = vector.broadcast %66 : vector<8x1xf32> to vector<8x256xf32>
    %69 = vector.broadcast %67 : vector<1x256xf32> to vector<8x256xf32>
    %70 = arith.mulf %68, %69 : vector<8x256xf32>
    %71 = arith.mulf %65, %70 : vector<8x256xf32>
    %72 = arith.addf %64, %71 : vector<8x256xf32>
    %c0_14 = arith.constant 0 : index
    %c0_15 = arith.constant 0 : index
    %73 = vector.load %arg5[%c0_14, %c0_15] : memref<8x256xf32, #tpu.memory_space<vmem>>, vector<8x256xf32>
    tpu.vector_store %arg5[%c0_14, %c0_15], %72 {strides = array<i32>} : memref<8x256xf32, #tpu.memory_space<vmem>>, vector<8x256xf32>,
    return
  }
  func.func @transform_0(%arg0: i32) -> (i32, i32) {
    %c0_i32 = arith.constant 0 : i32
    %c0_i32_0 = arith.constant 0 : i32
    return %arg0, %c0_i32 : i32, i32
  }
  func.func @transform_1(%arg0: i32) -> (i32, i32) {
    %c0_i32 = arith.constant 0 : i32
    %c0_i32_0 = arith.constant 0 : i32
    return %arg0, %c0_i32 : i32, i32
  }
  func.func @transform_2(%arg0: i32) -> (i32, i32) {
    %c0_i32 = arith.constant 0 : i32
    %c0_i32_0 = arith.constant 0 : i32
    return %arg0, %c0_i32 : i32, i32
  }
  func.func @transform_3(%arg0: i32) -> (i32, i32) {
    %c0_i32 = arith.constant 0 : i32
    %c0_i32_0 = arith.constant 0 : i32
    %c0_i32_1 = arith.constant 0 : i32
    return %c0_i32, %c0_i32_0 : i32, i32
  }
  func.func @transform_4(%arg0: i32) -> (i32, i32) {
    %c0_i32 = arith.constant 0 : i32
    %c0_i32_0 = arith.constant 0 : i32
    return %arg0, %c0_i32 : i32, i32
  }
}

</mosaic_0001>

<llo_original>
// kernel: tpu_custom_call.1
$region0: #{tpu_custom_call.1}
  #allocation0 [shape = 'u32[]', space=smem, size = 0x4, offset = 0x4, fixed_abs, tag = 'smem constant byte address 0x4 - core index']
  #allocation1 [shape = 'u32[144,128]{1,0:T(1,128)}', space=vmem, size = 0x12000, scoped, tag = 'internal scratch']
  %s0 = inlined_call_operand.hbm [shape: f32[8,256], index: 0, kind: input, shape index: {}]
  %s1 = inlined_call_operand.vmem [shape: f32[8,9], index: 1, kind: input, shape index: {}]
  %s2 = inlined_call_operand.vmem [shape: f32[8,1], index: 2, kind: input, shape index: {}]
  %s3 = inlined_call_operand.hbm [shape: f32[9,256], index: 3, kind: input, shape index: {}]
  %s4 = inlined_call_operand.hbm [shape: f32[8,256], index: 4, kind: output, shape index: {}]
  %s5 = sld [smem:[#allocation0]]
  $region34: #{tpu_custom_call.1} parent=0
    _
  %s7 = ssub.s32 1, %s5
  %s8 = scalar_select 0, %s7, %s5
  $region1: #{tpu_custom_call.1} parent=0
    #allocation2 [shape = 'u8[8192]{0}', space=vmem, size = 0x2000, scoped, tag = 'input window, operand 0, single buffered']
    #allocation3 [shape = 's32[1]{0}', space=sflag, size = 0x4, scoped, tag = 'scoped memory for tpu_custom_call.1']
    #allocation4 [shape = 's32[1]{0}', space=sflag, size = 0x4, scoped, tag = 'scoped memory for tpu_custom_call.1']
    #allocation5 [shape = 'u8[16384]{0}', space=vmem, size = 0x4000, scoped, tag = 'input window, operand 3, single buffered']
    #allocation6 [shape = 's32[1]{0}', space=sflag, size = 0x4, scoped, tag = 'scoped memory for tpu_custom_call.1']
    #allocation7 [shape = 'u8[8192]{0}', space=vmem, size = 0x2000, scoped, tag = 'output window, operand 0, single buffered']
    %9 = vsyncpa [#allocation3], 0
    %10 = vsyncpa [#allocation6], 0
    %11 = vsyncpa [#allocation4], 0
    // Predicated region
    $region2: #{tpu_custom_call.1} parent=1 // pred_check
      _
    $region3: #{tpu_custom_call.1} parent=1 // pred_check_branch
      %13 = sbr.rel (0) target = $region5
    $region4: #{tpu_custom_call.1} parent=1 // pred_region
      %s15 = ssub.s32 256, 256
      %16 = vsyncadd [#allocation3], %s15
      %s18 = sshll.u32 [#allocation2], 4
      %s19 = int_to_ptr.vmem [resolvable:$true] %s18
      %21 = dma.hbm_to_vmem [thread:$0]  %s0, 256, %s19, [#allocation3]
    $region5: #{tpu_custom_call.1} parent=1 // pred_fallthru
      _
    // Predicated region
    $region6: #{tpu_custom_call.1} parent=1 // pred_check
      _
    $region7: #{tpu_custom_call.1} parent=1 // pred_check_branch
      %23 = sbr.rel (0) target = $region9
    $region8: #{tpu_custom_call.1} parent=1 // pred_region
      _
    $region9: #{tpu_custom_call.1} parent=1 // pred_fallthru
      _
    // Predicated region
    $region10: #{tpu_custom_call.1} parent=1 // pred_check
      _
    $region11: #{tpu_custom_call.1} parent=1 // pred_check_branch
      %25 = sbr.rel (0) target = $region13
    $region12: #{tpu_custom_call.1} parent=1 // pred_region
      _
    $region13: #{tpu_custom_call.1} parent=1 // pred_fallthru
      _
    // Predicated region
    $region14: #{tpu_custom_call.1} parent=1 // pred_check
      _
    $region15: #{tpu_custom_call.1} parent=1 // pred_check_branch
      %27 = sbr.rel (0) target = $region17
    $region16: #{tpu_custom_call.1} parent=1 // pred_region
      %s29 = ssub.s32 512, 512
      %30 = vsyncadd [#allocation6], %s29
      %s31 = sshll.u32 [#allocation5], 4
      %s32 = int_to_ptr.vmem [resolvable:$true] %s31
      %37 = dma.hbm_to_vmem [thread:$0]  %s3, 512, %s32, [#allocation6], 256, 256, 16
    $region17: #{tpu_custom_call.1} parent=1 // pred_fallthru
      _
    // Predicated region
    $region18: #{tpu_custom_call.1} parent=1 // pred_check
      _
    $region19: #{tpu_custom_call.1} parent=1 // pred_check_branch
      %39 = sbr.rel (0) target = $region21
    $region20: #{tpu_custom_call.1} parent=1 // pred_region
      %40 = dma.done [#allocation3], 256
    $region21: #{tpu_custom_call.1} parent=1 // pred_fallthru
      _
    // Predicated region
    $region22: #{tpu_custom_call.1} parent=1 // pred_check
      _
    $region23: #{tpu_custom_call.1} parent=1 // pred_check_branch
      %42 = sbr.rel (0) target = $region25
    $region24: #{tpu_custom_call.1} parent=1 // pred_region
      %43 = dma.done [#allocation6], 512
    $region25: #{tpu_custom_call.1} parent=1 // pred_fallthru
      _
    %v44 = vld [vmem:[#allocation2] sm:$0xff]
    %v45 = vld [vmem:[#allocation2 + $0x8] sm:$0xff]
    %v46 = vld [vmem:[%s1] sm:$0xff]
    %v47 = vld [vmem:[%s2] sm:$0xff]
    %49 = vset.pattern.permute.xlu0 0
    %50 = vperm.xlu0 %49, %v47
    %v51 = vpop.permute.xlu0 %50
    %53 = vrot.lane.b32.xlu0 %v44, 17
    %v54 = vpop.permute.xlu0 %53
    %55 = vrot.lane.b32.xlu0 %v45, 17
    %v56 = vpop.permute.xlu0 %55
    %v57 = vlaneseq
    %v58 = vand.u32 %v57, 127
    %vm59 = vcmp.lt.s32.totalorder %v58, 17
    %v60 = vsel %vm59, %v54, %v56
    %v61 = vsel %vm59, %v56, %v54
    %v62 = vld [vmem:[#allocation5] ss:$8 sm:$0x3]
    %64 = vset.pattern.permute.xlu0 0
    %65 = vperm.xlu0 %64, %v46
    %v66 = vpop.permute.xlu0 %65
    %v69 = vlaneseq
    %v70 = vshrl.u32 %v69, 7
    %v71 = vsub.s32 0, %v70
    %v72 = vrot.slane %v62, %v71
    %v73 = vlaneseq
    %v74 = vshrl.u32 %v73, 7
    %v75 = vsub.s32 1, %v74
    %v76 = vrot.slane %v62, %v75
    %v79 = vmul.f32 %v66, %v72
    %v80 = vmul.f32 %v66, %v76
    %v81 = vmul.f32 %v61, %v79
    %v82 = vmul.f32 %v60, %v80
    %v83 = vadd.f32 %v51, %v81
    %v84 = vadd.f32 %v51, %v82
    %85 = vrot.lane.b32.xlu0 %v44, 16
    %v86 = vpop.permute.xlu0 %85
    %87 = vrot.lane.b32.xlu0 %v45, 16
    %v88 = vpop.permute.xlu0 %87
    %vm89 = vcmp.lt.s32.totalorder %v58, 16
    %v90 = vsel %vm89, %v86, %v88
    %v91 = vsel %vm89, %v88, %v86
    %s92 = scalar_lea.vmem [#allocation5], 1
    %v93 = vld [vmem:[%s92] ss:$8 sm:$0x3]
    %94 = vset.pattern.permute.xlu0 1
    %95 = vperm.xlu0 %94, %v46
    %v96 = vpop.permute.xlu0 %95
    %v99 = vlaneseq
    %v100 = vshrl.u32 %v99, 7
    %v101 = vsub.s32 0, %v100
    %v102 = vrot.slane %v93, %v101
    %v103 = vlaneseq
    %v104 = vshrl.u32 %v103, 7
    %v105 = vsub.s32 1, %v104
    %v106 = vrot.slane %v93, %v105
    %v109 = vmul.f32 %v96, %v102
    %v110 = vmul.f32 %v96, %v106
    %v111 = vmul.f32 %v91, %v109
    %v112 = vmul.f32 %v90, %v110
    %v113 = vadd.f32 %v83, %v111
    %v114 = vadd.f32 %v84, %v112
    %115 = vrot.lane.b32.xlu0 %v44, 15
    %v116 = vpop.permute.xlu0 %115
    %117 = vrot.lane.b32.xlu0 %v45, 15
    %v118 = vpop.permute.xlu0 %117
    %vm119 = vcmp.lt.s32.totalorder %v58, 15
    %v120 = vsel %vm119, %v116, %v118
    %v121 = vsel %vm119, %v118, %v116
    %s122 = scalar_lea.vmem [#allocation5], 2
    %v123 = vld [vmem:[%s122] ss:$8 sm:$0x3]
    %124 = vset.pattern.permute.xlu0 2
    %125 = vperm.xlu0 %124, %v46
    %v126 = vpop.permute.xlu0 %125
    %v129 = vlaneseq
    %v130 = vshrl.u32 %v129, 7
    %v131 = vsub.s32 0, %v130
    %v132 = vrot.slane %v123, %v131
    %v133 = vlaneseq
    %v134 = vshrl.u32 %v133, 7
    %v135 = vsub.s32 1, %v134
    %v136 = vrot.slane %v123, %v135
    %v139 = vmul.f32 %v126, %v132
    %v140 = vmul.f32 %v126, %v136
    %v141 = vmul.f32 %v121, %v139
    %v142 = vmul.f32 %v120, %v140
    %v143 = vadd.f32 %v113, %v141
    %v144 = vadd.f32 %v114, %v142
    %145 = vrot.lane.b32.xlu0 %v44, 1
    %v146 = vpop.permute.xlu0 %145
    %147 = vrot.lane.b32.xlu0 %v45, 1
    %v148 = vpop.permute.xlu0 %147
    %vm149 = vcmp.lt.s32.totalorder %v58, 1
    %v150 = vsel %vm149, %v146, %v148
    %v151 = vsel %vm149, %v148, %v146
    %s152 = scalar_lea.vmem [#allocation5], 3
    %v153 = vld [vmem:[%s152] ss:$8 sm:$0x3]
    %154 = vset.pattern.permute.xlu0 3
    %155 = vperm.xlu0 %154, %v46
    %v156 = vpop.permute.xlu0 %155
    %v159 = vlaneseq
    %v160 = vshrl.u32 %v159, 7
    %v161 = vsub.s32 0, %v160
    %v162 = vrot.slane %v153, %v161
    %v163 = vlaneseq
    %v164 = vshrl.u32 %v163, 7
    %v165 = vsub.s32 1, %v164
    %v166 = vrot.slane %v153, %v165
    %v169 = vmul.f32 %v156, %v162
    %v170 = vmul.f32 %v156, %v166
    %v171 = vmul.f32 %v151, %v169
    %v172 = vmul.f32 %v150, %v170
    %v173 = vadd.f32 %v143, %v171
    %v174 = vadd.f32 %v144, %v172
    %175 = vset.pattern.permute.xlu0 4
    %176 = vperm.xlu0 %175, %v46
    %v177 = vpop.permute.xlu0 %176
    %v179 = vmul.f32 %v44, %v177
    %v180 = vmul.f32 %v45, %v177
    %v181 = vadd.f32 %v173, %v179
    %v182 = vadd.f32 %v174, %v180
    %183 = vrot.lane.b32.xlu0 %v44, 127
    %v184 = vpop.permute.xlu0 %183
    %185 = vrot.lane.b32.xlu0 %v45, 127
    %v186 = vpop.permute.xlu0 %185
    %vm187 = vcmp.lt.s32.totalorder %v58, 127
    %v188 = vsel %vm187, %v184, %v186
    %v189 = vsel %vm187, %v186, %v184
    %s190 = scalar_lea.vmem [#allocation5], 5
    %v191 = vld [vmem:[%s190] ss:$8 sm:$0x3]
    %192 = vset.pattern.permute.xlu0 5
    %193 = vperm.xlu0 %192, %v46
    %v194 = vpop.permute.xlu0 %193
    %v197 = vlaneseq
    %v198 = vshrl.u32 %v197, 7
    %v199 = vsub.s32 0, %v198
    %v200 = vrot.slane %v191, %v199
    %v201 = vlaneseq
    %v202 = vshrl.u32 %v201, 7
    %v203 = vsub.s32 1, %v202
    %v204 = vrot.slane %v191, %v203
    %v207 = vmul.f32 %v194, %v200
    %v208 = vmul.f32 %v194, %v204
    %v209 = vmul.f32 %v188, %v207
    %v210 = vmul.f32 %v189, %v208
    %v211 = vadd.f32 %v181, %v209
    %v212 = vadd.f32 %v182, %v210
    %213 = vrot.lane.b32.xlu0 %v44, 113
    %v214 = vpop.permute.xlu0 %213
    %215 = vrot.lane.b32.xlu0 %v45, 113
    %v216 = vpop.permute.xlu0 %215
    %vm217 = vcmp.lt.s32.totalorder %v58, 113
    %v218 = vsel %vm217, %v214, %v216
    %v219 = vsel %vm217, %v216, %v214
    %s220 = scalar_lea.vmem [#allocation5], 6
    %v221 = vld [vmem:[%s220] ss:$8 sm:$0x3]
    %222 = vset.pattern.permute.xlu0 6
    %223 = vperm.xlu0 %222, %v46
    %v224 = vpop.permute.xlu0 %223
    %v227 = vlaneseq
    %v228 = vshrl.u32 %v227, 7
    %v229 = vsub.s32 0, %v228
    %v230 = vrot.slane %v221, %v229
    %v231 = vlaneseq
    %v232 = vshrl.u32 %v231, 7
    %v233 = vsub.s32 1, %v232
    %v234 = vrot.slane %v221, %v233
    %v237 = vmul.f32 %v224, %v230
    %v238 = vmul.f32 %v224, %v234
    %v239 = vmul.f32 %v218, %v237
    %v240 = vmul.f32 %v219, %v238
    %v241 = vadd.f32 %v211, %v239
    %v242 = vadd.f32 %v212, %v240
    %243 = vrot.lane.b32.xlu0 %v44, 112
    %v244 = vpop.permute.xlu0 %243
    %245 = vrot.lane.b32.xlu0 %v45, 112
    %v246 = vpop.permute.xlu0 %245
    %vm247 = vcmp.lt.s32.totalorder %v58, 112
    %v248 = vsel %vm247, %v244, %v246
    %v249 = vsel %vm247, %v246, %v244
    %s250 = scalar_lea.vmem [#allocation5], 7
    %v251 = vld [vmem:[%s250] ss:$8 sm:$0x3]
    %252 = vset.pattern.permute.xlu0 7
    %253 = vperm.xlu0 %252, %v46
    %v254 = vpop.permute.xlu0 %253
    %v257 = vlaneseq
    %v258 = vshrl.u32 %v257, 7
    %v259 = vsub.s32 0, %v258
    %v260 = vrot.slane %v251, %v259
    %v261 = vlaneseq
    %v262 = vshrl.u32 %v261, 7
    %v263 = vsub.s32 1, %v262
    %v264 = vrot.slane %v251, %v263
    %v267 = vmul.f32 %v254, %v260
    %v268 = vmul.f32 %v254, %v264
    %v269 = vmul.f32 %v248, %v267
    %v270 = vmul.f32 %v249, %v268
    %v271 = vadd.f32 %v241, %v269
    %v272 = vadd.f32 %v242, %v270
    %273 = vrot.lane.b32.xlu0 %v44, 111
    %v274 = vpop.permute.xlu0 %273
    %275 = vrot.lane.b32.xlu0 %v45, 111
    %v276 = vpop.permute.xlu0 %275
    %vm277 = vcmp.lt.s32.totalorder %v58, 111
    %v278 = vsel %vm277, %v274, %v276
    %v279 = vsel %vm277, %v276, %v274
    %s280 = scalar_lea.vmem [#allocation5], 16
    %v281 = vld [vmem:[%s280] ss:$8 sm:$0x3]
    %282 = vset.pattern.permute.xlu0 8
    %283 = vperm.xlu0 %282, %v46
    %v284 = vpop.permute.xlu0 %283
    %v287 = vlaneseq
    %v288 = vshrl.u32 %v287, 7
    %v289 = vsub.s32 0, %v288
    %v290 = vrot.slane %v281, %v289
    %v291 = vlaneseq
    %v292 = vshrl.u32 %v291, 7
    %v293 = vsub.s32 1, %v292
    %v294 = vrot.slane %v281, %v293
    %v297 = vmul.f32 %v284, %v290
    %v298 = vmul.f32 %v284, %v294
    %v299 = vmul.f32 %v278, %v297
    %v300 = vmul.f32 %v279, %v298
    %v301 = vadd.f32 %v271, %v299
    %v302 = vadd.f32 %v272, %v300
    %303 = vst [vmem:[#allocation7] sm:$0xff] %v301
    %304 = vst [vmem:[#allocation7 + $0x8] sm:$0xff] %v302
    // Predicated region
    $region26: #{tpu_custom_call.1} parent=1 // pred_check
      _
    $region27: #{tpu_custom_call.1} parent=1 // pred_check_branch
      %306 = sbr.rel (0) target = $region29
    $region28: #{tpu_custom_call.1} parent=1 // pred_region
      %s308 = ssub.s32 256, 256
      %309 = vsyncadd [#allocation4], %s308
      %s311 = sshll.u32 [#allocation7], 4
      %s312 = int_to_ptr.vmem [resolvable:$true] %s311
      %314 = dma.vmem_to_hbm [thread:$0]  %s312, 256, %s4, [#allocation4]
    $region29: #{tpu_custom_call.1} parent=1 // pred_fallthru
      _
    // Predicated region
    $region30: #{tpu_custom_call.1} parent=1 // pred_check
      _
    $region31: #{tpu_custom_call.1} parent=1 // pred_check_branch
      %316 = sbr.rel (0) target = $region33
    $region32: #{tpu_custom_call.1} parent=1 // pred_region
      %317 = dma.done [#allocation4], 256
    $region33: #{tpu_custom_call.1} parent=1 // pred_fallthru
      _
    %318 = vsyncpa [#allocation3], 1
    %319 = vsyncpa [#allocation6], 1
    %320 = vsyncpa [#allocation4], 1

</llo_original>
